<compile_context>
chip_gen: v7x
topology: tpu7x:2x2x1
jax: 0.10.0
libtpu: 0.0.40
codegen_flags: <defaults>
</compile_context>

<pallas_src>
import functools
import math

import jax
import jax.numpy as jnp
from jax import lax
from jax.experimental import pallas as pl
from jax.experimental.pallas import tpu as pltpu


_LANE_CHOICES = (512, 256, 128)   # lane-dense last dims (multiples of 128)
_MAX_BLOCK_ROWS = 2048            # up to 4 MiB (f32) / 2 MiB (bf16) per input tile
_MIN_ROWS = 16                    # below this the Pallas path is not worth it
_SMALL_INPUT_ELEMS = 1 << 18      # < 256K elements -> plain-JAX fast path
_VMEM_LIMIT_BYTES = 32 * 1024 * 1024


def _cdiv(a: int, b: int) -> int:
    return -(-a // b)


def _round_up(a: int, b: int) -> int:
    return _cdiv(a, b) * b


def _smooth_l1_sum_ref(preds, targets):
    """Plain-JAX smooth-L1 (sum) reference / fallback (single fused pass)."""
    d = preds.astype(jnp.float32) - targets.astype(jnp.float32)
    ad = jnp.abs(d)
    m = jnp.minimum(ad, 1.0)
    return jnp.sum(m * (ad - 0.5 * m))


def _loc_loss_kernel(p_ref, t_ref, out_ref, *, block_rows, lanes, valid_rows,
                     mask_tail):
    """Smooth-L1 over a lane-dense (block_rows, lanes) tile -> (8, lanes) partial."""
    p = p_ref[...].astype(jnp.float32)
    t = t_ref[...].astype(jnp.float32)
    diff = p - t
    adiff = jnp.abs(diff)
    # Branchless smooth-L1:  min(|d|,1) * (|d| - 0.5*min(|d|,1))
    #   |d| <  1 -> 0.5*d^2 ;  |d| >= 1 -> |d| - 0.5
    m = jnp.minimum(adiff, 1.0)
    elem = m * (adiff - 0.5 * m)

    if mask_tail:
        # Last grid block may extend past the real array; rows >= valid_rows
        # hold unspecified data -> zero them (where masks NaN/Inf garbage too).
        base = pl.program_id(0) * block_rows
        row_ids = base + lax.broadcasted_iota(jnp.int32, (block_rows, 1), 0)
        elem = jnp.where(row_ids < valid_rows, elem, 0.0)

    # Reduce to a vreg-shaped (8, lanes) partial: the reshape groups rows into
    # 8-sublane chunks (tile-aligned, no relayout) and the axis-0 sum is pure
    # VPU vadds.  The single expensive scalar reduction happens once, outside.
    partial = jnp.sum(elem.reshape(block_rows // 8, 8, lanes), axis=0)
    out_ref[...] = partial[None]


def loc_loss_pallas(preds: jnp.ndarray, targets: jnp.ndarray, *,
                    force_pallas: bool = False,
                    compute_dtype=None) -> jnp.ndarray:
    """Smooth-L1 localization loss (sum reduction), Pallas TPU accelerated.

    preds / targets: same-shaped float arrays (any float dtype; bf16 inputs
    halve HBM traffic and are accumulated in f32 inside the kernel).
    Returns a scalar float32.
    """
    assert preds.shape == targets.shape, "preds/targets must have equal shapes"
    if compute_dtype is not None:
        # Only a win if this cast fuses into the upstream producer of
        # preds/targets; as a standalone op it adds an extra HBM pass.
        preds = preds.astype(compute_dtype)
        targets = targets.astype(compute_dtype)

    total = math.prod(preds.shape) if preds.shape else 1
    if total == 0:
        return jnp.float32(0.0)

    # Small-input fast path: kernel launch + partial-sum overhead dwarfs the work.
    if (not force_pallas) and total < _SMALL_INPUT_ELEMS:
        return _smooth_l1_sum_ref(preds, targets)

    # Pick the widest lane-dense layout that divides the element count so the
    # 2D view is a pure bitcast (no pad, no slice, no extra HBM pass).
    lanes = next((l for l in _LANE_CHOICES if total % l == 0), None)
    if lanes is None or (total // lanes) < _MIN_ROWS:
        # TODO(synk): totals not divisible by 128 (or tiny) use the fused
        # plain-JAX pass instead of padding/slicing a copy of both inputs.
        return _smooth_l1_sum_ref(preds, targets)

    rows = total // lanes
    # >= 2 grid blocks whenever possible (v7x has 2 TCs on the parallel axis);
    # multiple of 16 keeps both f32 (8,128) and bf16 (16,128) tiling aligned.
    block_rows = min(_MAX_BLOCK_ROWS, _round_up(_cdiv(rows, 2), 16))
    num_blocks = _cdiv(rows, block_rows)
    mask_tail = (rows % block_rows) != 0

    p2 = preds.reshape(rows, lanes)      # bitcast reshape, no data movement
    t2 = targets.reshape(rows, lanes)

    kernel = functools.partial(
        _loc_loss_kernel,
        block_rows=block_rows, lanes=lanes, valid_rows=rows,
        mask_tail=mask_tail)

    partials = pl.pallas_call(
        kernel,
        out_shape=jax.ShapeDtypeStruct((num_blocks, 8, lanes), jnp.float32),
        grid=(num_blocks,),
        in_specs=[
            pl.BlockSpec((block_rows, lanes), lambda i: (i, 0)),
            pl.BlockSpec((block_rows, lanes), lambda i: (i, 0)),
        ],
        out_specs=pl.BlockSpec((1, 8, lanes), lambda i: (i, 0, 0)),
        compiler_params=pltpu.CompilerParams(
            dimension_semantics=("parallel",),
            vmem_limit_bytes=_VMEM_LIMIT_BYTES,
        ),
    )(p2, t2)

    # Single cross-lane/sublane reduction, done once outside the kernel.
    return jnp.sum(partials)


class LocLoss:
    """Faithful port of the reference nn.Module (no params, empty forward)."""

    def __init__(self, *args, **kwargs) -> None:
        # reference __init__ defines no parameters / buffers
        pass

    def forward(self, preds, targets):
        # TODO(synk): reference forward body is `pass` (returns None); there is
        # no computation to translate.  The Pallas smooth-L1 hot path
        # (loc_loss_pallas) is provided separately as the representative
        # localization-loss compute but is intentionally not invoked here.
        return None

    __call__ = forward


if __name__ == "__main__":
    key = jax.random.PRNGKey(0)
    k1, k2, k3, k4, k5, k6 = jax.random.split(key, 6)

    # --- Faithful module forward (returns None, exactly like the reference). ---
    B, N, C = 2, 8, 4
    preds_small = jax.random.normal(k1, (B, N, C), dtype=jnp.float32)
    targets_list = [
        jax.random.normal(jax.random.fold_in(k2, i), (N, C), dtype=jnp.float32)
        for i in range(B)
    ]
    targets_small = jnp.stack(targets_list, axis=0)
    module = LocLoss()
    assert module(preds_small, targets_list) is None

    # --- Small-input fast path (no kernel launch). ---
    loss_small = jax.block_until_ready(loc_loss_pallas(preds_small, targets_small))
    ref_small = jax.block_until_ready(_smooth_l1_sum_ref(preds_small, targets_small))
    assert jnp.allclose(loss_small, ref_small, rtol=1e-5, atol=1e-5)

    # --- Pallas path A: f32, lane-divisible, 2 parallel blocks, no tail mask. ---
    pa = jax.random.normal(k3, (4, 1024, 4), dtype=jnp.float32)
    ta = jax.random.normal(k4, (4, 1024, 4), dtype=jnp.float32)
    loss_a = jax.block_until_ready(loc_loss_pallas(pa, ta, force_pallas=True))
    ref_a = jax.block_until_ready(_smooth_l1_sum_ref(pa, ta))
    assert jnp.allclose(loss_a, ref_a, rtol=1e-4, atol=1e-2), (loss_a, ref_a)

    # --- Pallas path B: native bf16 inputs, ragged last block (row mask). ---
    pb = jax.random.normal(k5, (3, 1536, 4), dtype=jnp.float32).astype(jnp.bfloat16)
    tb = jax.random.normal(k6, (3, 1536, 4), dtype=jnp.float32).astype(jnp.bfloat16)
    loss_b = jax.block_until_ready(loc_loss_pallas(pb, tb, force_pallas=True))
    ref_b = jax.block_until_ready(_smooth_l1_sum_ref(pb, tb))
    assert jnp.allclose(loss_b, ref_b, rtol=1e-3, atol=1e-1), (loss_b, ref_b)

    print("KERNEL_OK")
</pallas_src>

<mosaic_0001>
module attributes {stable_mosaic.version = 11 : i64} {
  func.func @_loc_loss_kernel(%arg0: i32, %arg1: memref<16x512xf32, #tpu.memory_space<vmem>>, %arg2: memref<16x512xf32, #tpu.memory_space<vmem>>, %arg3: memref<1x8x512xf32, #tpu.memory_space<vmem>>) attributes {dimension_semantics = [#tpu.dimension_semantics<parallel>], iteration_bounds = array<i64: 2>, scalar_prefetch = 0 : i64, scratch_operands = 0 : i64, tpu.core_type = #tpu.core_type<tc>, window_params = [{transform_indices = @transform_0, window_bounds = array<i64: 16, 512>}, {transform_indices = @transform_1, window_bounds = array<i64: 16, 512>}, {transform_indices = @transform_2, window_bounds = array<i64: 1, 8, 512>}]} {
    %c0 = arith.constant 0 : index
    %c0_0 = arith.constant 0 : index
    %0 = vector.load %arg1[%c0, %c0_0] : memref<16x512xf32, #tpu.memory_space<vmem>>, vector<16x512xf32>
    %c0_1 = arith.constant 0 : index
    %c0_2 = arith.constant 0 : index
    %1 = vector.load %arg2[%c0_1, %c0_2] : memref<16x512xf32, #tpu.memory_space<vmem>>, vector<16x512xf32>
    %2 = arith.subf %0, %1 : vector<16x512xf32>
    %3 = math.absf %2 : vector<16x512xf32>
    %cst = arith.constant 1.000000e+00 : f32
    %4 = vector.broadcast %cst : f32 to vector<16x512xf32>
    %5 = arith.minimumf %3, %4 : vector<16x512xf32>
    %cst_3 = arith.constant 5.000000e-01 : f32
    %6 = vector.broadcast %cst_3 : f32 to vector<16x512xf32>
    %7 = arith.mulf %6, %5 : vector<16x512xf32>
    %8 = arith.subf %3, %7 : vector<16x512xf32>
    %9 = arith.mulf %5, %8 : vector<16x512xf32>
    %10 = vector.shape_cast %9 : vector<16x512xf32> to vector<2x8x512xf32>
    %cst_4 = arith.constant dense<0.000000e+00> : vector<8x512xf32>
    %11 = vector.multi_reduction <add>, %10, %cst_4 [0] : vector<2x8x512xf32> to vector<8x512xf32>
    %12 = vector.shape_cast %11 : vector<8x512xf32> to vector<1x8x512xf32>
    %c0_5 = arith.constant 0 : index
    %c0_6 = arith.constant 0 : index
    %c0_7 = arith.constant 0 : index
    %13 = vector.load %arg3[%c0_5, %c0_6, %c0_7] : memref<1x8x512xf32, #tpu.memory_space<vmem>>, vector<1x8x512xf32>
    tpu.vector_store %arg3[%c0_5, %c0_6, %c0_7], %12 {strides = array<i32>} : memref<1x8x512xf32, #tpu.memory_space<vmem>>, vector<1x8x512xf32>,
    return
  }
  func.func @transform_0(%arg0: i32) -> (i32, i32) {
    %c0_i32 = arith.constant 0 : i32
    %c0_i32_0 = arith.constant 0 : i32
    return %arg0, %c0_i32 : i32, i32
  }
  func.func @transform_1(%arg0: i32) -> (i32, i32) {
    %c0_i32 = arith.constant 0 : i32
    %c0_i32_0 = arith.constant 0 : i32
    return %arg0, %c0_i32 : i32, i32
  }
  func.func @transform_2(%arg0: i32) -> (i32, i32, i32) {
    %c0_i32 = arith.constant 0 : i32
    %c0_i32_0 = arith.constant 0 : i32
    %c0_i32_1 = arith.constant 0 : i32
    return %arg0, %c0_i32, %c0_i32_0 : i32, i32, i32
  }
}

</mosaic_0001>

<llo_original>
// kernel: tpu_custom_call.1
$region0: #{tpu_custom_call.1}
  #allocation0 [shape = 'u32[]', space=smem, size = 0x4, offset = 0x4, fixed_abs, tag = 'smem constant byte address 0x4 - core index']
  #allocation1 [shape = 'u32[144,128]{1,0:T(1,128)}', space=vmem, size = 0x12000, scoped, tag = 'internal scratch']
  %s0 = inlined_call_operand.hbm [shape: f32[32,512], index: 0, kind: input, shape index: {}]
  %s1 = inlined_call_operand.hbm [shape: f32[32,512], index: 1, kind: input, shape index: {}]
  %s2 = inlined_call_operand.hbm [shape: f32[2,8,512], index: 2, kind: output, shape index: {}]
  %s3 = sld [smem:[#allocation0]]
  $region49: #{tpu_custom_call.1} parent=0
    _
  %s5 = ssub.s32 1, %s3
  %s6 = scalar_select 0, %s5, %s3
  $region1: #{tpu_custom_call.1} parent=0
    #allocation2 [shape = 'u8[65536]{0}', space=vmem, size = 0x10000, scoped, tag = 'input window, operand 0']
    #allocation3 [shape = 's32[2]{0}', space=sflag, size = 0x8, scoped, tag = 'scoped memory for tpu_custom_call.1']
    #allocation4 [shape = 's32[2]{0}', space=sflag, size = 0x8, scoped, tag = 'scoped memory for tpu_custom_call.1']
    #allocation5 [shape = 'u8[65536]{0}', space=vmem, size = 0x10000, scoped, tag = 'input window, operand 1']
    #allocation6 [shape = 's32[2]{0}', space=sflag, size = 0x8, scoped, tag = 'scoped memory for tpu_custom_call.1']
    #allocation7 [shape = 'u8[32768]{0}', space=vmem, size = 0x8000, scoped, tag = 'output window, operand 0']
    %7 = vsyncpa [#allocation3], 0
    %s8 = scalar_lea.sflag [#allocation3], 1
    %9 = vsyncpa %s8, 0
    %10 = vsyncpa [#allocation6], 0
    %s11 = scalar_lea.sflag [#allocation6], 1
    %12 = vsyncpa %s11, 0
    %13 = vsyncpa [#allocation4], 0
    %s14 = scalar_lea.sflag [#allocation4], 1
    %15 = vsyncpa %s14, 0
    loop: start=0, step=1, limit=4
    $region2: #{tpu_custom_call.1} parent=1 // loop_pre_header
      _
    $region3: #{tpu_custom_call.1} parent=1 // loop_header
      %s17 = sphi 0, %s21
      %p18 = scmp.ge.s32.totalorder %s17, 4
      %s27 = sphi 0, %s29
      %s30 = sphi 0, %s27
      %s31 = sphi 0, %s30
      %s47 = sphi 0, %s31
      %s53 = sphi 0, %s55
      %s56 = sphi 0, %s53
      %s57 = sphi 0, %s56
      %s73 = sphi 0, %s57
      %s79 = sphi 0, %s81
      %s82 = sphi 0, %s79
      %s83 = sphi 0, %s82
      %s99 = sphi 0, %s83
    $region4: #{tpu_custom_call.1} parent=1 // loop_header_branch
      %20 = sbr.rel (%p18) target = $region8
    $region5: #{tpu_custom_call.1} parent=1 // loop_body
      %s22 = ssub.s32 %s17, 1
      %s23 = ssub.s32 %s17, 2
      %s24 = sadd.s32 %s17, 1
      %s25 = ssub.s32 %s17, %s24
      %p26 = scmp.eq.s32.totalorder %s25, 0
      %s28 = sadd.s32 %s27, 1
      %s29 = scalar_select %p26, %s27, %s28
      %p32 = pneg %p26
      %p33 = scmp.eq.s32.totalorder %s17, 1
      %p34 = por %p32, %p33
      %p35 = scmp.ne.s32.totalorder %s27, %s30
      %p36 = scmp.eq.s32.totalorder %s17, 0
      %p37 = por %p35, %p36
      %p38 = scmp.ne.s32.totalorder %s27, %s30
      %p39 = scmp.eq.s32.totalorder %s22, 1
      %p40 = por %p38, %p39
      %p41 = scmp.ne.s32.totalorder %s30, %s31
      %p42 = scmp.eq.s32.totalorder %s22, 0
      %p43 = por %p41, %p42
      %p44 = scmp.ne.s32.totalorder %s30, %s31
      %p45 = scmp.eq.s32.totalorder %s23, 1
      %p46 = por %p44, %p45
      %p48 = scmp.ne.s32.totalorder %s31, %s47
      %p49 = scmp.eq.s32.totalorder %s23, 0
      %p50 = por %p48, %p49
      %s51 = ssub.s32 %s17, %s24
      %p52 = scmp.eq.s32.totalorder %s51, 0
      %s54 = sadd.s32 %s53, 1
      %s55 = scalar_select %p52, %s53, %s54
      %p58 = pneg %p52
      %p59 = scmp.eq.s32.totalorder %s17, 1
      %p60 = por %p58, %p59
      %p61 = scmp.ne.s32.totalorder %s53, %s56
      %p62 = scmp.eq.s32.totalorder %s17, 0
      %p63 = por %p61, %p62
      %p64 = scmp.ne.s32.totalorder %s53, %s56
      %p65 = scmp.eq.s32.totalorder %s22, 1
      %p66 = por %p64, %p65
      %p67 = scmp.ne.s32.totalorder %s56, %s57
      %p68 = scmp.eq.s32.totalorder %s22, 0
      %p69 = por %p67, %p68
      %p70 = scmp.ne.s32.totalorder %s56, %s57
      %p71 = scmp.eq.s32.totalorder %s23, 1
      %p72 = por %p70, %p71
      %p74 = scmp.ne.s32.totalorder %s57, %s73
      %p75 = scmp.eq.s32.totalorder %s23, 0
      %p76 = por %p74, %p75
      %s77 = ssub.s32 %s17, %s24
      %p78 = scmp.eq.s32.totalorder %s77, 0
      %s80 = sadd.s32 %s79, 1
      %s81 = scalar_select %p78, %s79, %s80
      %p84 = pneg %p78
      %p85 = scmp.eq.s32.totalorder %s17, 1
      %p86 = por %p84, %p85
      %p87 = scmp.ne.s32.totalorder %s79, %s82
      %p88 = scmp.eq.s32.totalorder %s17, 0
      %p89 = por %p87, %p88
      %p90 = scmp.ne.s32.totalorder %s79, %s82
      %p91 = scmp.eq.s32.totalorder %s22, 1
      %p92 = por %p90, %p91
      %p93 = scmp.ne.s32.totalorder %s82, %s83
      %p94 = scmp.eq.s32.totalorder %s22, 0
      %p95 = por %p93, %p94
      %p96 = scmp.ne.s32.totalorder %s82, %s83
      %p97 = scmp.eq.s32.totalorder %s23, 1
      %p98 = por %p96, %p97
      %p100 = scmp.ne.s32.totalorder %s83, %s99
      %p101 = scmp.eq.s32.totalorder %s23, 0
      %p102 = por %p100, %p101
      %p103 = scmp.le.s32.totalorder 1, %s17
      %p104 = scmp.lt.s32.totalorder %s17, 3
      %p105 = pnand %p103, %p104
      %p106 = pneg %p105
      // Predicated region
      $region9: #{tpu_custom_call.1} parent=5 // pred_check
        _
      $region10: #{tpu_custom_call.1} parent=5 // pred_check_branch
        %108 = sbr.rel (%p105) target = $region12
      $region11: #{tpu_custom_call.1} parent=5 // pred_region
        %s109 = ssub.s32 %s17, 1
      $region12: #{tpu_custom_call.1} parent=5 // pred_fallthru
        _
      %p110 = scmp.lt.s32.totalorder %s17, 2
      // Predicated region
      $region13: #{tpu_custom_call.1} parent=5 // pred_check
        %p111 = pneg %p110
      $region14: #{tpu_custom_call.1} parent=5 // pred_check_branch
        %113 = sbr.rel (%p111) target = $region16
      $region15: #{tpu_custom_call.1} parent=5 // pred_region
        // Predicated region
        $region17: #{tpu_custom_call.1} parent=15 // pred_check
          %p114 = pneg %p37
        $region18: #{tpu_custom_call.1} parent=15 // pred_check_branch
          %116 = sbr.rel (%p114) target = $region20
        $region19: #{tpu_custom_call.1} parent=15 // pred_region
          %s117 = sand.u32 %s27, 1
          %s118 = scalar_lea.sflag [#allocation3], %s117
          %s119 = sand.u32 %s27, 1
          %s120 = smul.addr %s119, 64
          %s121 = scalar_lea.vmem [#allocation2], %s120
          %s122 = smul.u32 2, %s17
          %s124 = ssub.s32 1024, 1024
          %125 = vsyncadd %s118, %s124
          %s126 = smul.addr %s122, 4
          %s127 = smul.addr %s126, 128
          %s128 = scalar_lea.hbm %s0, %s127
          %s129 = sshll.u32 %s121, 4
          %s130 = int_to_ptr.vmem [resolvable:$true] %s129
          %135 = dma.hbm_to_vmem [thread:$0]  %s128, 1024, %s130, %s118, 512, 512, 32
        $region20: #{tpu_custom_call.1} parent=15 // pred_fallthru
          _
        // Predicated region
        $region21: #{tpu_custom_call.1} parent=15 // pred_check
          %p136 = pneg %p63
        $region22: #{tpu_custom_call.1} parent=15 // pred_check_branch
          %138 = sbr.rel (%p136) target = $region24
        $region23: #{tpu_custom_call.1} parent=15 // pred_region
          %s139 = sand.u32 %s53, 1
          %s140 = scalar_lea.sflag [#allocation6], %s139
          %s141 = sand.u32 %s53, 1
          %s142 = smul.addr %s141, 64
          %s143 = scalar_lea.vmem [#allocation5], %s142
          %s144 = smul.u32 2, %s17
          %s146 = ssub.s32 1024, 1024
          %147 = vsyncadd %s140, %s146
          %s148 = smul.addr %s144, 4
          %s149 = smul.addr %s148, 128
          %s150 = scalar_lea.hbm %s1, %s149
          %s151 = sshll.u32 %s143, 4
          %s152 = int_to_ptr.vmem [resolvable:$true] %s151
          %157 = dma.hbm_to_vmem [thread:$0]  %s150, 1024, %s152, %s140, 512, 512, 32
        $region24: #{tpu_custom_call.1} parent=15 // pred_fallthru
          _
      $region16: #{tpu_custom_call.1} parent=5 // pred_fallthru
        _
      %p158 = scmp.le.s32.totalorder 1, %s17
      %p159 = scmp.lt.s32.totalorder %s17, 3
      %p160 = pnand %p158, %p159
      %p161 = pneg %p160
      // Predicated region
      $region25: #{tpu_custom_call.1} parent=5 // pred_check
        _
      $region26: #{tpu_custom_call.1} parent=5 // pred_check_branch
        %163 = sbr.rel (%p160) target = $region28
      $region27: #{tpu_custom_call.1} parent=5 // pred_region
        %s164 = ssub.s32 %s17, 1
        %s165 = sand.u32 %s30, 1
        %s166 = scalar_lea.sflag [#allocation3], %s165
        %s167 = sand.u32 %s30, 1
        %s168 = smul.addr %s167, 64
        %s169 = scalar_lea.vmem [#allocation2], %s168
        // Predicated region
        $region29: #{tpu_custom_call.1} parent=27 // pred_check
          %p170 = pneg %p43
        $region30: #{tpu_custom_call.1} parent=27 // pred_check_branch
          %172 = sbr.rel (%p170) target = $region32
        $region31: #{tpu_custom_call.1} parent=27 // pred_region
          %173 = dma.done %s166, 1024
        $region32: #{tpu_custom_call.1} parent=27 // pred_fallthru
          _
        %s174 = sand.u32 %s56, 1
        %s175 = scalar_lea.sflag [#allocation6], %s174
        %s176 = sand.u32 %s56, 1
        %s177 = smul.addr %s176, 64
        %s178 = scalar_lea.vmem [#allocation5], %s177
        // Predicated region
        $region33: #{tpu_custom_call.1} parent=27 // pred_check
          %p179 = pneg %p69
        $region34: #{tpu_custom_call.1} parent=27 // pred_check_branch
          %181 = sbr.rel (%p179) target = $region36
        $region35: #{tpu_custom_call.1} parent=27 // pred_region
          %182 = dma.done %s175, 1024
        $region36: #{tpu_custom_call.1} parent=27 // pred_fallthru
          _
        %s183 = sand.u32 %s30, 1
        %s184 = scalar_lea.sflag [#allocation3], %s183
        %s185 = sand.u32 %s30, 1
        %s186 = smul.addr %s185, 64
        %s187 = scalar_lea.vmem [#allocation2], %s186
        %p188 = pneg %p43
        %p189 = pneg %p40
        %s190 = sand.u32 %s56, 1
        %s191 = scalar_lea.sflag [#allocation6], %s190
        %s192 = sand.u32 %s56, 1
        %s193 = smul.addr %s192, 64
        %s194 = scalar_lea.vmem [#allocation5], %s193
        %p195 = pneg %p69
        %p196 = pneg %p66
        %p197 = pneg %p95
        %p198 = pneg %p92
        %s199 = sand.u32 %s82, 1
        %s200 = scalar_lea.sflag [#allocation4], %s199
        %s201 = sand.u32 %s82, 1
        %s202 = smul.addr %s201, 32
        %s203 = scalar_lea.vmem [#allocation7], %s202
        %s204 = smul.u32 2, %s22
        %s205 = smul.u32 2, %s22
        %v206 = vld [vmem:[%s169] sm:$0xff]
        %v207 = vld [vmem:[%s169 + $0x8] sm:$0xff]
        %v208 = vld [vmem:[%s169 + $0x10] sm:$0xff]
        %v209 = vld [vmem:[%s169 + $0x18] sm:$0xff]
        %v210 = vld [vmem:[%s169 + $0x20] sm:$0xff]
        %v211 = vld [vmem:[%s169 + $0x28] sm:$0xff]
        %v212 = vld [vmem:[%s169 + $0x30] sm:$0xff]
        %v213 = vld [vmem:[%s169 + $0x38] sm:$0xff]
        %v214 = vld [vmem:[%s178] sm:$0xff]
        %v215 = vld [vmem:[%s178 + $0x8] sm:$0xff]
        %v216 = vld [vmem:[%s178 + $0x10] sm:$0xff]
        %v217 = vld [vmem:[%s178 + $0x18] sm:$0xff]
        %v218 = vld [vmem:[%s178 + $0x20] sm:$0xff]
        %v219 = vld [vmem:[%s178 + $0x28] sm:$0xff]
        %v220 = vld [vmem:[%s178 + $0x30] sm:$0xff]
        %v221 = vld [vmem:[%s178 + $0x38] sm:$0xff]
        %v222 = vsub.f32 %v206, %v214
        %v223 = vsub.f32 %v207, %v215
        %v224 = vsub.f32 %v208, %v216
        %v225 = vsub.f32 %v209, %v217
        %v226 = vsub.f32 %v210, %v218
        %v227 = vsub.f32 %v211, %v219
        %v228 = vsub.f32 %v212, %v220
        %v229 = vsub.f32 %v213, %v221
        %v230 = vand.u32 2147483647, %v222
        %v231 = vand.u32 2147483647, %v223
        %v232 = vand.u32 2147483647, %v224
        %v233 = vand.u32 2147483647, %v225
        %v234 = vand.u32 2147483647, %v226
        %v235 = vand.u32 2147483647, %v227
        %v236 = vand.u32 2147483647, %v228
        %v237 = vand.u32 2147483647, %v229
        %v238 = vmin.f32 %v230, 1.0
        %v239 = vmin.f32 %v231, 1.0
        %v240 = vmin.f32 %v232, 1.0
        %v241 = vmin.f32 %v233, 1.0
        %v242 = vmin.f32 %v234, 1.0
        %v243 = vmin.f32 %v235, 1.0
        %v244 = vmin.f32 %v236, 1.0
        %v245 = vmin.f32 %v237, 1.0
        %v246 = vmul.f32 %v238, 0.5
        %v247 = vmul.f32 %v239, 0.5
        %v248 = vmul.f32 %v240, 0.5
        %v249 = vmul.f32 %v241, 0.5
        %v250 = vmul.f32 %v242, 0.5
        %v251 = vmul.f32 %v243, 0.5
        %v252 = vmul.f32 %v244, 0.5
        %v253 = vmul.f32 %v245, 0.5
        %v254 = vsub.f32 %v230, %v246
        %v255 = vsub.f32 %v231, %v247
        %v256 = vsub.f32 %v232, %v248
        %v257 = vsub.f32 %v233, %v249
        %v258 = vsub.f32 %v234, %v250
        %v259 = vsub.f32 %v235, %v251
        %v260 = vsub.f32 %v236, %v252
        %v261 = vsub.f32 %v237, %v253
        %v262 = vmul.f32 %v238, %v254
        %v263 = vmul.f32 %v239, %v255
        %v264 = vmul.f32 %v240, %v256
        %v265 = vmul.f32 %v241, %v257
        %v266 = vmul.f32 %v242, %v258
        %v267 = vmul.f32 %v243, %v259
        %v268 = vmul.f32 %v244, %v260
        %v269 = vmul.f32 %v245, %v261
        %v270 = vadd.f32 %v262, %v266
        %v271 = vadd.f32 %v263, %v267
        %v272 = vadd.f32 %v264, %v268
        %v273 = vadd.f32 %v265, %v269
        %274 = vst [vmem:[%s203] sm:$0xff] %v270
        %275 = vst [vmem:[%s203 + $0x8] sm:$0xff] %v271
        %276 = vst [vmem:[%s203 + $0x10] sm:$0xff] %v272
        %277 = vst [vmem:[%s203 + $0x18] sm:$0xff] %v273
        %s278 = sand.u32 %s82, 1
        %s279 = scalar_lea.sflag [#allocation4], %s278
        %s280 = sand.u32 %s82, 1
        %s281 = smul.addr %s280, 32
        %s282 = scalar_lea.vmem [#allocation7], %s281
        // Predicated region
        $region37: #{tpu_custom_call.1} parent=27 // pred_check
          %p283 = pneg %p92
        $region38: #{tpu_custom_call.1} parent=27 // pred_check_branch
          %285 = sbr.rel (%p283) target = $region40
        $region39: #{tpu_custom_call.1} parent=27 // pred_region
          %s287 = ssub.s32 512, 512
          %288 = vsyncadd %s279, %s287
          %s289 = smul.addr %s22, 4
          %s290 = smul.addr %s289, 128
          %s291 = scalar_lea.hbm %s2, %s290
          %s293 = sshll.u32 %s282, 4
          %s294 = int_to_ptr.vmem [resolvable:$true] %s293
          %296 = dma.vmem_to_hbm [thread:$0]  %s294, 512, %s291, %s279
        $region40: #{tpu_custom_call.1} parent=27 // pred_fallthru
          _
      $region28: #{tpu_custom_call.1} parent=5 // pred_fallthru
        _
      %p297 = scmp.le.s32.totalorder 2, %s17
      // Predicated region
      $region41: #{tpu_custom_call.1} parent=5 // pred_check
        %p298 = pneg %p297
      $region42: #{tpu_custom_call.1} parent=5 // pred_check_branch
        %300 = sbr.rel (%p298) target = $region44
      $region43: #{tpu_custom_call.1} parent=5 // pred_region
        %s301 = ssub.s32 %s17, 2
        // Predicated region
        $region45: #{tpu_custom_call.1} parent=43 // pred_check
          %p302 = pneg %p98
        $region46: #{tpu_custom_call.1} parent=43 // pred_check_branch
          %304 = sbr.rel (%p302) target = $region48
        $region47: #{tpu_custom_call.1} parent=43 // pred_region
          %s305 = sand.u32 %s83, 1
          %s306 = scalar_lea.sflag [#allocation4], %s305
          %s307 = sand.u32 %s83, 1
          %s308 = smul.addr %s307, 32
          %s309 = scalar_lea.vmem [#allocation7], %s308
          %310 = dma.done %s306, 512
        $region48: #{tpu_custom_call.1} parent=43 // pred_fallthru
          _
      $region44: #{tpu_custom_call.1} parent=5 // pred_fallthru
        _
    $region6: #{tpu_custom_call.1} parent=1 // loop_footer
      %s21 = sadd.s32 1, %s17
    $region7: #{tpu_custom_call.1} parent=1 // loop_footer_branch
      %16 = sbr.rel target = $region3
    $region8: #{tpu_custom_call.1} parent=1 // loop_exit
      _
    %311 = vsyncpa [#allocation3], 1
    %s312 = scalar_lea.sflag [#allocation3], 1
    %313 = vsyncpa %s312, 1
    %314 = vsyncpa [#allocation6], 1
    %s315 = scalar_lea.sflag [#allocation6], 1
    %316 = vsyncpa %s315, 1
    %317 = vsyncpa [#allocation4], 1
    %s318 = scalar_lea.sflag [#allocation4], 1
    %319 = vsyncpa %s318, 1

</llo_original>
